<compile_context>
chip_gen: v6e
topology: v6e:2x2x1
jax: 0.10.0
libtpu: 0.0.40
codegen_flags: <defaults>
</compile_context>

<pallas_src>
import functools

import jax
import jax.numpy as jnp
from jax import lax
from jax.experimental import pallas as pl
from jax.experimental.pallas import tpu as pltpu

_INT32_MAX = (1 << 31) - 1


def _round_up(x, m):
    return (x + m - 1) // m * m


def _distance_score_kernel(x1_ref, x2_ref, sq2_ref, out_ref, score_ref, *,
                           topk, n2_valid):
    # x1_ref: (tm, D) input dtype; x2_ref: (N2p, D) input dtype (grid-resident)
    # sq2_ref: (1, N2p) f32 precomputed ||X2||^2 (padded columns are masked).
    x1 = x1_ref[...]
    x2 = x2_ref[...]

    # MXU: contract over the last dim of BOTH operands -> no transpose of x2,
    # operands stay in their input dtype, accumulate in f32.
    g = lax.dot_general(x1, x2, dimension_numbers=(((1,), (1,)), ((), ())),
                        preferred_element_type=jnp.float32)        # (tm, N2p)

    x1f = x1.astype(jnp.float32)
    sq1 = jnp.sum(x1f * x1f, axis=1, keepdims=True)                # (tm, 1)
    sq2 = sq2_ref[...]                                             # (1, N2p)

    # Squared distances; selection is on d2 (sqrt is monotone, deferred).
    d2 = jnp.maximum(sq1 + sq2 - 2.0 * g, 0.0)                     # (tm, N2p)

    tm, n2p = d2.shape
    col_ids = lax.broadcasted_iota(jnp.int32, (tm, n2p), 1)

    # Pack the column index into the low mantissa bits of d2's (non-negative ->
    # order-preserving) int32 bit pattern.  One int-min per iteration then
    # yields both the exact argmin column and its value, truncated by `bits`
    # low mantissa bits (relative d2 error <= 2^(bits-23); ~2e-6 for N2<=16).
    bits = max(1, (n2_valid - 1).bit_length())
    low_mask = jnp.int32((1 << bits) - 1)
    hi_mask = jnp.int32(~((1 << bits) - 1))
    int_max = jnp.int32(_INT32_MAX)

    d2_bits = pltpu.bitcast(d2, jnp.int32) & int_max               # clear any -0.0 sign
    d2_hi = d2_bits & hi_mask                                      # truncated value bits
    keyed = d2_hi | col_ids
    keyed = jnp.where(col_ids >= n2_valid, int_max, keyed)         # mask lane padding

    work = keyed
    sel_any = jnp.zeros((tm, n2p), jnp.bool_)
    denom = jnp.zeros((tm, 1), jnp.float32)
    exp_cols = []
    m0 = None
    for j in range(topk):                                          # topk: small & static
        mkey = jnp.min(work, axis=1, keepdims=True)                # single XLU pass
        pos = mkey & low_mask                                      # exact argmin column
        d2_j = pltpu.bitcast(mkey & hi_mask, jnp.float32)          # truncated sq. dist
        v_j = -jnp.sqrt(d2_j)                                      # (tm, 1)
        if j == 0:
            m0 = v_j                                               # softmax stabilizer
        e_j = jnp.exp(v_j - m0)                                    # (tm, 1)
        denom = denom + e_j
        exp_cols.append(e_j)
        sel = col_ids == pos                                       # one-hot row select
        sel_any = jnp.logical_or(sel_any, sel)                     # 1 VPU op / iter
        work = jnp.where(sel, int_max, work)                       # mask extracted entry

    # Approx reciprocal (EUP slot) + one Newton step back to ~f32 precision.
    inv0 = pl.reciprocal(denom, approx=True)
    inv = inv0 * (2.0 - denom * inv0)

    # Dense scatter as a single masked epilogue (exp -> EUP).  Values are
    # recomputed from the same truncated d2 bits, so the scattered entries
    # match `score` exactly.
    neg_dist_t = -jnp.sqrt(pltpu.bitcast(d2_hi, jnp.float32))
    p_full = jnp.exp(neg_dist_t - m0) * inv
    out_ref[...] = jnp.where(sel_any, p_full, 0.0)
    score_ref[...] = jnp.concatenate(exp_cols, axis=1) * inv


def distance_score(x1, x2, *, topk, method="softmax", block_rows=None):
    """Pallas implementation of DistanceScore.forward (softmax + topk branch)."""
    assert method == "softmax", "only the well-defined softmax+topk branch is implemented"
    assert topk is not None and topk >= 1
    n1, d = x1.shape
    n2, d_2 = x2.shape
    assert d == d_2
    assert topk <= n2, "topk must not exceed the number of reference points"

    # Mean-center both point sets (distances are translation-invariant) to
    # limit cancellation in the ||a||^2 + ||b||^2 - 2ab identity.
    center = jnp.mean(x2.astype(jnp.float32), axis=0, keepdims=True)
    x1c = (x1.astype(jnp.float32) - center).astype(x1.dtype)
    x2c = (x2.astype(jnp.float32) - center).astype(x2.dtype)

    # Lane-dense padding of the N2 (output / lane) axis to a multiple of 128.
    n2p = _round_up(n2, 128)

    # Row tile: multiple of 8, capped at 256 and by a conservative VMEM budget
    # (~16 live f32 copies of the (tm, n2p) working set) so it also fits
    # v7x's smaller 64 MiB VMEM.
    if block_rows is None:
        vmem_budget = 24 * 1024 * 1024
        cap = max(8, (vmem_budget // (16 * 4 * n2p)) // 8 * 8)
        block_rows = min(256, _round_up(n1, 8), cap)
    tm = block_rows
    n1p = _round_up(n1, tm)

    x1p = jnp.zeros((n1p, d), x1.dtype).at[:n1].set(x1c)
    x2p = jnp.zeros((n2p, d), x2.dtype).at[:n2].set(x2c)
    sq2 = jnp.sum(x2p.astype(jnp.float32) ** 2, axis=1)[None, :]   # (1, n2p) f32

    kernel = functools.partial(_distance_score_kernel, topk=topk, n2_valid=n2)
    out_p, score_p = pl.pallas_call(
        kernel,
        out_shape=(
            jax.ShapeDtypeStruct((n1p, n2p), jnp.float32),
            jax.ShapeDtypeStruct((n1p, topk), jnp.float32),
        ),
        grid=(n1p // tm,),
        in_specs=[
            pl.BlockSpec((tm, d), lambda i: (i, 0)),       # row tile of X1
            pl.BlockSpec((n2p, d), lambda i: (0, 0)),      # X2 resident across grid
            pl.BlockSpec((1, n2p), lambda i: (0, 0)),      # ||X2||^2 resident
        ],
        out_specs=(
            pl.BlockSpec((tm, n2p), lambda i: (i, 0)),
            pl.BlockSpec((tm, topk), lambda i: (i, 0)),
        ),
        compiler_params=pltpu.CompilerParams(
            dimension_semantics=("parallel",),
            vmem_limit_bytes=48 * 1024 * 1024,
        ),
    )(x1p, x2p, sq2)
    return out_p[:n1, :n2], score_p[:n1]


def _reference(x1, x2, topk):
    """Pure-JAX reference for the same branch (uses lax.top_k)."""
    d2 = jnp.sum((x1[:, None, :] - x2[None, :, :]) ** 2, axis=-1)
    neg_dist = -jnp.sqrt(d2)
    val, idx = lax.top_k(neg_dist, topk)
    score = jax.nn.softmax(val, axis=1)
    out = jnp.zeros_like(neg_dist)
    out = out.at[jnp.arange(x1.shape[0])[:, None], idx].set(score)
    return out, score


if __name__ == "__main__":
    key = jax.random.PRNGKey(0)
    k1, k2, k3, k4 = jax.random.split(key, 4)

    # Test 1: original demo shapes (single row-block).
    N1, N2, D, TOPK = 8, 16, 32, 4
    X1 = jax.random.normal(k1, (N1, D), dtype=jnp.float32)
    X2 = jax.random.normal(k2, (N2, D), dtype=jnp.float32)

    out, score = distance_score(X1, X2, topk=TOPK, method="softmax")
    jax.block_until_ready((out, score))

    ref_out, ref_score = _reference(X1, X2, TOPK)
    assert out.shape == (N1, N2) and score.shape == (N1, TOPK)
    assert jnp.allclose(out, ref_out, atol=1e-4), "out mismatch vs reference"
    assert jnp.allclose(score, ref_score, atol=1e-4), "score mismatch vs reference"

    # Test 2: exercises the multi-block row grid (grid=(3,)) and N2 padding.
    N1b, N2b, Db, TOPKb = 24, 20, 16, 3
    X1b = jax.random.normal(k3, (N1b, Db), dtype=jnp.float32)
    X2b = jax.random.normal(k4, (N2b, Db), dtype=jnp.float32)

    out_b, score_b = distance_score(X1b, X2b, topk=TOPKb, method="softmax",
                                    block_rows=8)
    jax.block_until_ready((out_b, score_b))

    ref_out_b, ref_score_b = _reference(X1b, X2b, TOPKb)
    assert out_b.shape == (N1b, N2b) and score_b.shape == (N1b, TOPKb)
    assert jnp.allclose(out_b, ref_out_b, atol=1e-4), "out mismatch vs reference (grid)"
    assert jnp.allclose(score_b, ref_score_b, atol=1e-4), "score mismatch vs reference (grid)"

    print("KERNEL_OK")
</pallas_src>

<mosaic_0001>
module attributes {stable_mosaic.version = 11 : i64} {
  func.func @_distance_score_kernel(%arg0: i32, %arg1: memref<8x32xf32, #tpu.memory_space<vmem>>, %arg2: memref<128x32xf32, #tpu.memory_space<vmem>>, %arg3: memref<1x128xf32, #tpu.memory_space<vmem>>, %arg4: memref<8x128xf32, #tpu.memory_space<vmem>>, %arg5: memref<8x4xf32, #tpu.memory_space<vmem>>) attributes {dimension_semantics = [#tpu.dimension_semantics<parallel>], iteration_bounds = array<i64: 1>, scalar_prefetch = 0 : i64, scratch_operands = 0 : i64, tpu.core_type = #tpu.core_type<tc>, window_params = [{transform_indices = @transform_0, window_bounds = array<i64: 8, 32>}, {pipeline_mode = #tpu.pipeline_mode<synchronous>, transform_indices = @transform_1, window_bounds = array<i64: 128, 32>}, {pipeline_mode = #tpu.pipeline_mode<synchronous>, transform_indices = @transform_2, window_bounds = array<i64: 1, 128>}, {transform_indices = @transform_3, window_bounds = array<i64: 8, 128>}, {transform_indices = @transform_4, window_bounds = array<i64: 8, 4>}]} {
    %c0 = arith.constant 0 : index
    %c0_0 = arith.constant 0 : index
    %0 = vector.load %arg1[%c0, %c0_0] : memref<8x32xf32, #tpu.memory_space<vmem>>, vector<8x32xf32>
    %c0_1 = arith.constant 0 : index
    %c0_2 = arith.constant 0 : index
    %1 = vector.load %arg2[%c0_1, %c0_2] : memref<128x32xf32, #tpu.memory_space<vmem>>, vector<128x32xf32>
    %cst = arith.constant dense<0.000000e+00> : vector<8x128xf32>
    %2 = tpu.matmul %0, %1, %cst {dimension_numbers = #tpu.dot_dimension_numbers<[1], [1], [0], [0], [0, 0, 1, 0], [], []>} : vector<8x32xf32>, vector<128x32xf32>, vector<8x128xf32> -> vector<8x128xf32>
    %3 = arith.mulf %0, %0 : vector<8x32xf32>
    %cst_3 = arith.constant dense<0.000000e+00> : vector<8xf32>
    %4 = vector.multi_reduction <add>, %3, %cst_3 [1] : vector<8x32xf32> to vector<8xf32>
    %5 = vector.shape_cast %4 : vector<8xf32> to vector<8x1xf32>
    %c0_4 = arith.constant 0 : index
    %c0_5 = arith.constant 0 : index
    %6 = vector.load %arg3[%c0_4, %c0_5] : memref<1x128xf32, #tpu.memory_space<vmem>>, vector<1x128xf32>
    %7 = vector.broadcast %5 : vector<8x1xf32> to vector<8x128xf32>
    %8 = vector.broadcast %6 : vector<1x128xf32> to vector<8x128xf32>
    %9 = arith.addf %7, %8 : vector<8x128xf32>
    %cst_6 = arith.constant 2.000000e+00 : f32
    %10 = vector.broadcast %cst_6 : f32 to vector<8x128xf32>
    %11 = arith.mulf %10, %2 : vector<8x128xf32>
    %12 = arith.subf %9, %11 : vector<8x128xf32>
    %cst_7 = arith.constant 0.000000e+00 : f32
    %13 = vector.broadcast %cst_7 : f32 to vector<8x128xf32>
    %14 = arith.maximumf %12, %13 : vector<8x128xf32>
    %15 = tpu.iota {dimensions = array<i32: 1>} : vector<8x128xi32>
    %16 = tpu.bitcast %14 : vector<8x128xf32> -> vector<8x128xi32>
    %c2147483647_i32 = arith.constant 2147483647 : i32
    %17 = vector.broadcast %c2147483647_i32 : i32 to vector<8x128xi32>
    %18 = arith.andi %16, %17 : vector<8x128xi32>
    %c-16_i32 = arith.constant -16 : i32
    %19 = vector.broadcast %c-16_i32 : i32 to vector<8x128xi32>
    %20 = arith.andi %18, %19 : vector<8x128xi32>
    %21 = arith.ori %20, %15 : vector<8x128xi32>
    %c16_i32 = arith.constant 16 : i32
    %22 = vector.broadcast %c16_i32 : i32 to vector<8x128xi32>
    %23 = arith.cmpi sge, %15, %22 : vector<8x128xi32>
    %c2147483647_i32_8 = arith.constant 2147483647 : i32
    %24 = vector.broadcast %c2147483647_i32_8 : i32 to vector<8x128xi32>
    %25 = arith.select %23, %24, %21 : vector<8x128xi1>, vector<8x128xi32>
    %false = arith.constant false
    %26 = vector.broadcast %false : i1 to vector<8x128xi1>
    %cst_9 = arith.constant 0.000000e+00 : f32
    %27 = vector.broadcast %cst_9 : f32 to vector<8x1xf32>
    %cst_10 = arith.constant dense<2147483647> : vector<8xi32>
    %28 = vector.multi_reduction <minsi>, %25, %cst_10 [1] : vector<8x128xi32> to vector<8xi32>
    %29 = vector.shape_cast %28 : vector<8xi32> to vector<8x1xi32>
    %c15_i32 = arith.constant 15 : i32
    %30 = vector.broadcast %c15_i32 : i32 to vector<8x1xi32>
    %31 = arith.andi %29, %30 : vector<8x1xi32>
    %c-16_i32_11 = arith.constant -16 : i32
    %32 = vector.broadcast %c-16_i32_11 : i32 to vector<8x1xi32>
    %33 = arith.andi %29, %32 : vector<8x1xi32>
    %34 = tpu.bitcast %33 : vector<8x1xi32> -> vector<8x1xf32>
    %35 = math.sqrt %34 : vector<8x1xf32>
    %cst_12 = arith.constant 0.000000e+00 : f32
    %36 = vector.broadcast %cst_12 : f32 to vector<8x1xf32>
    %37 = arith.subf %36, %35 : vector<8x1xf32>
    %38 = arith.subf %37, %37 : vector<8x1xf32>
    %39 = math.exp %38 : vector<8x1xf32>
    %40 = arith.addf %27, %39 : vector<8x1xf32>
    %41 = vector.broadcast %31 : vector<8x1xi32> to vector<8x128xi32>
    %42 = arith.cmpi eq, %15, %41 : vector<8x128xi32>
    %43 = arith.ori %26, %42 : vector<8x128xi1>
    %c2147483647_i32_13 = arith.constant 2147483647 : i32
    %44 = vector.broadcast %c2147483647_i32_13 : i32 to vector<8x128xi32>
    %45 = arith.select %42, %44, %25 : vector<8x128xi1>, vector<8x128xi32>
    %cst_14 = arith.constant dense<2147483647> : vector<8xi32>
    %46 = vector.multi_reduction <minsi>, %45, %cst_14 [1] : vector<8x128xi32> to vector<8xi32>
    %47 = vector.shape_cast %46 : vector<8xi32> to vector<8x1xi32>
    %c15_i32_15 = arith.constant 15 : i32
    %48 = vector.broadcast %c15_i32_15 : i32 to vector<8x1xi32>
    %49 = arith.andi %47, %48 : vector<8x1xi32>
    %c-16_i32_16 = arith.constant -16 : i32
    %50 = vector.broadcast %c-16_i32_16 : i32 to vector<8x1xi32>
    %51 = arith.andi %47, %50 : vector<8x1xi32>
    %52 = tpu.bitcast %51 : vector<8x1xi32> -> vector<8x1xf32>
    %53 = math.sqrt %52 : vector<8x1xf32>
    %cst_17 = arith.constant 0.000000e+00 : f32
    %54 = vector.broadcast %cst_17 : f32 to vector<8x1xf32>
    %55 = arith.subf %54, %53 : vector<8x1xf32>
    %56 = arith.subf %55, %37 : vector<8x1xf32>
    %57 = math.exp %56 : vector<8x1xf32>
    %58 = arith.addf %40, %57 : vector<8x1xf32>
    %59 = vector.broadcast %49 : vector<8x1xi32> to vector<8x128xi32>
    %60 = arith.cmpi eq, %15, %59 : vector<8x128xi32>
    %61 = arith.ori %43, %60 : vector<8x128xi1>
    %c2147483647_i32_18 = arith.constant 2147483647 : i32
    %62 = vector.broadcast %c2147483647_i32_18 : i32 to vector<8x128xi32>
    %63 = arith.select %60, %62, %45 : vector<8x128xi1>, vector<8x128xi32>
    %cst_19 = arith.constant dense<2147483647> : vector<8xi32>
    %64 = vector.multi_reduction <minsi>, %63, %cst_19 [1] : vector<8x128xi32> to vector<8xi32>
    %65 = vector.shape_cast %64 : vector<8xi32> to vector<8x1xi32>
    %c15_i32_20 = arith.constant 15 : i32
    %66 = vector.broadcast %c15_i32_20 : i32 to vector<8x1xi32>
    %67 = arith.andi %65, %66 : vector<8x1xi32>
    %c-16_i32_21 = arith.constant -16 : i32
    %68 = vector.broadcast %c-16_i32_21 : i32 to vector<8x1xi32>
    %69 = arith.andi %65, %68 : vector<8x1xi32>
    %70 = tpu.bitcast %69 : vector<8x1xi32> -> vector<8x1xf32>
    %71 = math.sqrt %70 : vector<8x1xf32>
    %cst_22 = arith.constant 0.000000e+00 : f32
    %72 = vector.broadcast %cst_22 : f32 to vector<8x1xf32>
    %73 = arith.subf %72, %71 : vector<8x1xf32>
    %74 = arith.subf %73, %37 : vector<8x1xf32>
    %75 = math.exp %74 : vector<8x1xf32>
    %76 = arith.addf %58, %75 : vector<8x1xf32>
    %77 = vector.broadcast %67 : vector<8x1xi32> to vector<8x128xi32>
    %78 = arith.cmpi eq, %15, %77 : vector<8x128xi32>
    %79 = arith.ori %61, %78 : vector<8x128xi1>
    %c2147483647_i32_23 = arith.constant 2147483647 : i32
    %80 = vector.broadcast %c2147483647_i32_23 : i32 to vector<8x128xi32>
    %81 = arith.select %78, %80, %63 : vector<8x128xi1>, vector<8x128xi32>
    %cst_24 = arith.constant dense<2147483647> : vector<8xi32>
    %82 = vector.multi_reduction <minsi>, %81, %cst_24 [1] : vector<8x128xi32> to vector<8xi32>
    %83 = vector.shape_cast %82 : vector<8xi32> to vector<8x1xi32>
    %c15_i32_25 = arith.constant 15 : i32
    %84 = vector.broadcast %c15_i32_25 : i32 to vector<8x1xi32>
    %85 = arith.andi %83, %84 : vector<8x1xi32>
    %c-16_i32_26 = arith.constant -16 : i32
    %86 = vector.broadcast %c-16_i32_26 : i32 to vector<8x1xi32>
    %87 = arith.andi %83, %86 : vector<8x1xi32>
    %88 = tpu.bitcast %87 : vector<8x1xi32> -> vector<8x1xf32>
    %89 = math.sqrt %88 : vector<8x1xf32>
    %cst_27 = arith.constant 0.000000e+00 : f32
    %90 = vector.broadcast %cst_27 : f32 to vector<8x1xf32>
    %91 = arith.subf %90, %89 : vector<8x1xf32>
    %92 = arith.subf %91, %37 : vector<8x1xf32>
    %93 = math.exp %92 : vector<8x1xf32>
    %94 = arith.addf %76, %93 : vector<8x1xf32>
    %95 = vector.broadcast %85 : vector<8x1xi32> to vector<8x128xi32>
    %96 = arith.cmpi eq, %15, %95 : vector<8x128xi32>
    %97 = arith.ori %79, %96 : vector<8x128xi1>
    %98 = tpu.reciprocal %94 {approx = true} : vector<8x1xf32> -> vector<8x1xf32>
    %99 = arith.mulf %94, %98 : vector<8x1xf32>
    %cst_28 = arith.constant 2.000000e+00 : f32
    %100 = vector.broadcast %cst_28 : f32 to vector<8x1xf32>
    %101 = arith.subf %100, %99 : vector<8x1xf32>
    %102 = arith.mulf %98, %101 : vector<8x1xf32>
    %103 = tpu.bitcast %20 : vector<8x128xi32> -> vector<8x128xf32>
    %104 = math.sqrt %103 : vector<8x128xf32>
    %cst_29 = arith.constant 0.000000e+00 : f32
    %105 = vector.broadcast %cst_29 : f32 to vector<8x128xf32>
    %106 = arith.subf %105, %104 : vector<8x128xf32>
    %107 = vector.broadcast %37 : vector<8x1xf32> to vector<8x128xf32>
    %108 = arith.subf %106, %107 : vector<8x128xf32>
    %109 = math.exp %108 : vector<8x128xf32>
    %110 = vector.broadcast %102 : vector<8x1xf32> to vector<8x128xf32>
    %111 = arith.mulf %109, %110 : vector<8x128xf32>
    %cst_30 = arith.constant 0.000000e+00 : f32
    %112 = vector.broadcast %cst_30 : f32 to vector<8x128xf32>
    %113 = arith.select %97, %111, %112 : vector<8x128xi1>, vector<8x128xf32>
    %c0_31 = arith.constant 0 : index
    %c0_32 = arith.constant 0 : index
    %114 = vector.load %arg4[%c0_31, %c0_32] : memref<8x128xf32, #tpu.memory_space<vmem>>, vector<8x128xf32>
    tpu.vector_store %arg4[%c0_31, %c0_32], %113 {strides = array<i32>} : memref<8x128xf32, #tpu.memory_space<vmem>>, vector<8x128xf32>,
    %115 = tpu.concatenate %39, %57, %75, %93 in 1 : vector<8x1xf32>, vector<8x1xf32>, vector<8x1xf32>, vector<8x1xf32> -> vector<8x4xf32>
    %116 = vector.broadcast %102 : vector<8x1xf32> to vector<8x4xf32>
    %117 = arith.mulf %115, %116 : vector<8x4xf32>
    %c0_33 = arith.constant 0 : index
    %c0_34 = arith.constant 0 : index
    %118 = vector.load %arg5[%c0_33, %c0_34] : memref<8x4xf32, #tpu.memory_space<vmem>>, vector<8x4xf32>
    tpu.vector_store %arg5[%c0_33, %c0_34], %117 {strides = array<i32>} : memref<8x4xf32, #tpu.memory_space<vmem>>, vector<8x4xf32>,
    return
  }
  func.func @transform_0(%arg0: i32) -> (i32, i32) {
    %c0_i32 = arith.constant 0 : i32
    %c0_i32_0 = arith.constant 0 : i32
    return %arg0, %c0_i32 : i32, i32
  }
  func.func @transform_1(%arg0: i32) -> (i32, i32) {
    %c0_i32 = arith.constant 0 : i32
    %c0_i32_0 = arith.constant 0 : i32
    %c0_i32_1 = arith.constant 0 : i32
    return %c0_i32, %c0_i32_0 : i32, i32
  }
  func.func @transform_2(%arg0: i32) -> (i32, i32) {
    %c0_i32 = arith.constant 0 : i32
    %c0_i32_0 = arith.constant 0 : i32
    %c0_i32_1 = arith.constant 0 : i32
    return %c0_i32, %c0_i32_0 : i32, i32
  }
  func.func @transform_3(%arg0: i32) -> (i32, i32) {
    %c0_i32 = arith.constant 0 : i32
    %c0_i32_0 = arith.constant 0 : i32
    return %arg0, %c0_i32 : i32, i32
  }
  func.func @transform_4(%arg0: i32) -> (i32, i32) {
    %c0_i32 = arith.constant 0 : i32
    %c0_i32_0 = arith.constant 0 : i32
    return %arg0, %c0_i32 : i32, i32
  }
}

</mosaic_0001>

<llo_original>
// kernel: tpu_custom_call.1
$region0: #{tpu_custom_call.1}
  #allocation0 [shape = 'u32[]', space=smem, size = 0x4, offset = 0x4, fixed_abs, tag = 'smem constant byte address 0x4 - core index']
  #allocation1 [shape = 'u32[144,128]{1,0:T(1,128)}', space=vmem, size = 0x12000, scoped, tag = 'internal scratch']
  %s0 = inlined_call_operand.vmem [shape: f32[8,32], index: 0, kind: input, shape index: {}]
  %s1 = inlined_call_operand.vmem [shape: f32[128,32], index: 1, kind: input, shape index: {}]
  %s2 = inlined_call_operand.vmem [shape: f32[1,128], index: 2, kind: input, shape index: {}]
  %s3 = inlined_call_operand.hbm [shape: f32[8,128], index: 3, kind: output, shape index: {0}]
  %s4 = inlined_call_operand.vmem [shape: f32[8,4], index: 4, kind: output, shape index: {1}]
  %5 = xla_tuple %s3, %s4
  %s6 = sld [smem:[#allocation0]]
  $region30: #{tpu_custom_call.1} parent=0
    _
  %s8 = ssub.s32 1, %s6
  %s9 = scalar_select 0, %s8, %s6
  $region1: #{tpu_custom_call.1} parent=0
    #allocation2 [shape = 'u8[4096]{0}', space=vmem, size = 0x1000, scoped, tag = 'output window, operand 0, single buffered']
    #allocation3 [shape = 's32[1]{0}', space=sflag, size = 0x4, scoped, tag = 'scoped memory for tpu_custom_call.1']
    %10 = vsyncpa [#allocation3], 0
    // Predicated region
    $region2: #{tpu_custom_call.1} parent=1 // pred_check
      _
    $region3: #{tpu_custom_call.1} parent=1 // pred_check_branch
      %12 = sbr.rel (0) target = $region5
    $region4: #{tpu_custom_call.1} parent=1 // pred_region
      _
    $region5: #{tpu_custom_call.1} parent=1 // pred_fallthru
      _
    // Predicated region
    $region6: #{tpu_custom_call.1} parent=1 // pred_check
      _
    $region7: #{tpu_custom_call.1} parent=1 // pred_check_branch
      %14 = sbr.rel (0) target = $region9
    $region8: #{tpu_custom_call.1} parent=1 // pred_region
      _
    $region9: #{tpu_custom_call.1} parent=1 // pred_fallthru
      _
    // Predicated region
    $region10: #{tpu_custom_call.1} parent=1 // pred_check
      _
    $region11: #{tpu_custom_call.1} parent=1 // pred_check_branch
      %16 = sbr.rel (0) target = $region13
    $region12: #{tpu_custom_call.1} parent=1 // pred_region
      _
    $region13: #{tpu_custom_call.1} parent=1 // pred_fallthru
      _
    %v17 = vld [vmem:[%s0] sm:$0xff]
    %v18 = vld [vmem:[%s1] sm:$0xff]
    %v19 = vld [vmem:[%s1 + $0x8] sm:$0xff]
    %v20 = vld [vmem:[%s1 + $0x10] sm:$0xff]
    %v21 = vld [vmem:[%s1 + $0x18] sm:$0xff]
    %v22 = vld [vmem:[%s1 + $0x20] sm:$0xff]
    %v23 = vld [vmem:[%s1 + $0x28] sm:$0xff]
    %v24 = vld [vmem:[%s1 + $0x30] sm:$0xff]
    %v25 = vld [vmem:[%s1 + $0x38] sm:$0xff]
    %v26 = vld [vmem:[%s1 + $0x40] sm:$0xff]
    %v27 = vld [vmem:[%s1 + $0x48] sm:$0xff]
    %v28 = vld [vmem:[%s1 + $0x50] sm:$0xff]
    %v29 = vld [vmem:[%s1 + $0x58] sm:$0xff]
    %v30 = vld [vmem:[%s1 + $0x60] sm:$0xff]
    %v31 = vld [vmem:[%s1 + $0x68] sm:$0xff]
    %v32 = vld [vmem:[%s1 + $0x70] sm:$0xff]
    %v33 = vld [vmem:[%s1 + $0x78] sm:$0xff]
    %vm34 = vcmask 261120
    %v36 = vsel %vm34, %v17, 0
    %v39 = vsel %vm34, %v18, 0
    %v42 = vsel %vm34, %v19, 0
    %v45 = vsel %vm34, %v20, 0
    %v48 = vsel %vm34, %v21, 0
    %v51 = vsel %vm34, %v22, 0
    %v54 = vsel %vm34, %v23, 0
    %v57 = vsel %vm34, %v24, 0
    %v60 = vsel %vm34, %v25, 0
    %v63 = vsel %vm34, %v26, 0
    %v66 = vsel %vm34, %v27, 0
    %v69 = vsel %vm34, %v28, 0
    %v72 = vsel %vm34, %v29, 0
    %v75 = vsel %vm34, %v30, 0
    %v78 = vsel %vm34, %v31, 0
    %v81 = vsel %vm34, %v32, 0
    %v84 = vsel %vm34, %v33, 0
    %86 = vmatprep.subr.mxu0 0.0
    %87 = vmatpush1.xpose.msra.mxu0 %v84
    %88 = vmatprep.subr.mxu0 0.0
    %89 = vmatpush1.xpose.msra.mxu0 %v81
    %90 = vmatprep.subr.mxu0 0.0
    %91 = vmatpush1.xpose.msra.mxu0 %v78
    %92 = vmatprep.subr.mxu0 0.0
    %93 = vmatpush1.xpose.msra.mxu0 %v75
    %94 = vmatprep.subr.mxu0 0.0
    %95 = vmatpush1.xpose.msra.mxu0 %v72
    %96 = vmatprep.subr.mxu0 0.0
    %97 = vmatpush1.xpose.msra.mxu0 %v69
    %98 = vmatprep.subr.mxu0 0.0
    %99 = vmatpush1.xpose.msra.mxu0 %v66
    %100 = vmatprep.subr.mxu0 0.0
    %101 = vmatpush1.xpose.msra.mxu0 %v63
    %102 = vmatprep.subr.mxu0 0.0
    %103 = vmatpush1.xpose.msra.mxu0 %v60
    %104 = vmatprep.subr.mxu0 0.0
    %105 = vmatpush1.xpose.msra.mxu0 %v57
    %106 = vmatprep.subr.mxu0 0.0
    %107 = vmatpush1.xpose.msra.mxu0 %v54
    %108 = vmatprep.subr.mxu0 0.0
    %109 = vmatpush1.xpose.msra.mxu0 %v51
    %110 = vmatprep.subr.mxu0 0.0
    %111 = vmatpush1.xpose.msra.mxu0 %v48
    %112 = vmatprep.subr.mxu0 0.0
    %113 = vmatpush1.xpose.msra.mxu0 %v45
    %114 = vmatprep.subr.mxu0 0.0
    %115 = vmatpush1.xpose.msra.mxu0 %v42
    %116 = vmatprep.subr.mxu0 0.0
    %117 = vmatpush1.xpose.msra.mxu0 %v39
    %118 = vmatprep.subr.mxu0 0.0
    %119 = vmatpush2.xpose.msra.mxu0 0.0
    %120 = vmatprep.subr.mxu0 0.0
    %121 = vmatpush2.xpose.msra.mxu0 0.0
    %122 = vmatprep.subr.mxu0 0.0
    %123 = vmatpush2.xpose.msra.mxu0 0.0
    %124 = vmatprep.subr.mxu0 0.0
    %125 = vmatpush2.xpose.msra.mxu0 0.0
    %126 = vmatprep.subr.mxu0 0.0
    %127 = vmatpush2.xpose.msra.mxu0 0.0
    %128 = vmatprep.subr.mxu0 0.0
    %129 = vmatpush2.xpose.msra.mxu0 0.0
    %130 = vmatprep.subr.mxu0 0.0
    %131 = vmatpush2.xpose.msra.mxu0 0.0
    %132 = vmatprep.subr.mxu0 0.0
    %133 = vmatpush2.xpose.msra.mxu0 0.0
    %134 = vmatprep.subr.mxu0 0.0
    %135 = vmatpush2.xpose.msra.mxu0 0.0
    %136 = vmatprep.subr.mxu0 0.0
    %137 = vmatpush2.xpose.msra.mxu0 0.0
    %138 = vmatprep.subr.mxu0 0.0
    %139 = vmatpush2.xpose.msra.mxu0 0.0
    %140 = vmatprep.subr.mxu0 0.0
    %141 = vmatpush2.xpose.msra.mxu0 0.0
    %142 = vmatprep.subr.mxu0 0.0
    %143 = vmatpush2.xpose.msra.mxu0 0.0
    %144 = vmatprep.subr.mxu0 0.0
    %145 = vmatpush2.xpose.msra.mxu0 0.0
    %146 = vmatprep.subr.mxu0 0.0
    %147 = vmatpush2.xpose.msra.mxu0 0.0
    %148 = vmatprep.subr.mxu0 0.0
    %149 = vmatpush2.xpose.msra.mxu0 0.0
    %150 = vmatprep.mubr.f32.mxu0 0.0
    %151 = vmatmul.mubr.f32.gmra.mxu0 %v36
    %v152 = vpop.f32.mrf.mxu0
    %v153 = vadd.f32 0.0, %v152
    %v154 = vpop.f32.mrf.mxu0
    %155 = vdwg.mxu0
    %v156 = vmul.f32 %v17, %v17
    %v157 = vsel %vm34, %v156, 0.0
    %158 = vadd.xlane.f32.xlu0 %v157
    %v159 = vpop.xlane.xlu0 %158
    %v160 = vld [vmem:[%s2] sm:$0x1]
    %v162 = vlaneseq
    %v163 = vshrl.u32 %v162, 7
    %v164 = vsub.s32 0, %v163
    %v165 = vrot.slane %v160, %v164
    %v167 = vadd.f32 %v159, %v165
    %v168 = vmul.f32 %v153, 2.0
    %v169 = vsub.f32 %v167, %v168
    %v170 = vmax.f32 %v169, 0.0
    %v171 = vlaneseq
    %v172 = vand.u32 %v171, 127
    %v174 = vand.u32 %v170, 2147483647
    %v175 = vand.u32 %v174, 4294967280
    %v176 = vor.u32 %v175, %v172
    %vm177 = vcmp.ge.s32.totalorder %v172, 16
    %v178 = vsel %vm177, 2147483647, %v176
    %v179 = vand.u32 %v178, 65535
    %v180 = vshra.s32 %v178, 16
    %v181 = vcvt.s32.f32 %v179
    %v182 = vcvt.s32.f32 %v180
    %183 = vmin.xlane.f32.xlu0 %v182
    %v184 = vpop.xlane.xlu0 %183
    %vm185 = vcmp.eq.f32.partialorder %v182, %v184
    %v186 = vsel %vm185, %v181, inf
    %187 = vmin.xlane.f32.xlu0 %v186
    %v188 = vpop.xlane.xlu0 %187
    %v189 = vcvt.f32.s32 %v188
    %v190 = vcvt.f32.s32 %v184
    %v191 = vshll.u32 %v190, 16
    %v192 = vadd.s32 %v191, %v189
    %v193 = vand.u32 %v192, 15
    %v194 = vand.u32 %v192, 4294967280
    %v196 = vrsqrt.pop %v194
    %v197 = vmul.f32 %v194, %v196
    %vm198 = vcmp.eq.f32.partialorder %v194, inf
    %v199 = vsel %vm198, %v194, %v197
    %vm200 = vcmp.eq.f32.partialorder %v194, 0.0
    %v201 = vand.u32 %v194, 2147483648
    %v202 = vsel %vm200, %v201, %v199
    %v203 = vsub.f32 0.0, %v202
    %v204 = vsub.f32 %v203, %v203
    %v205 = vmul.f32 %v204, 1.442695
    %v206 = vpow.pop %v205
    %v207 = vadd.f32 %v206, 0.0
    %vm208 = vcmp.eq.s32.totalorder %v172, %v193
    %v209 = vsel %vm208, 2147483647, %v178
    %v210 = vand.u32 %v209, 65535
    %v211 = vshra.s32 %v209, 16
    %v212 = vcvt.s32.f32 %v210
    %v213 = vcvt.s32.f32 %v211
    %214 = vmin.xlane.f32.xlu0 %v213
    %v215 = vpop.xlane.xlu0 %214
    %vm216 = vcmp.eq.f32.partialorder %v213, %v215
    %v217 = vsel %vm216, %v212, inf
    %218 = vmin.xlane.f32.xlu0 %v217
    %v219 = vpop.xlane.xlu0 %218
    %v220 = vcvt.f32.s32 %v219
    %v221 = vcvt.f32.s32 %v215
    %v222 = vshll.u32 %v221, 16
    %v223 = vadd.s32 %v222, %v220
    %v224 = vand.u32 %v223, 15
    %v225 = vand.u32 %v223, 4294967280
    %v227 = vrsqrt.pop %v225
    %v228 = vmul.f32 %v225, %v227
    %vm229 = vcmp.eq.f32.partialorder %v225, inf
    %v230 = vsel %vm229, %v225, %v228
    %vm231 = vcmp.eq.f32.partialorder %v225, 0.0
    %v232 = vand.u32 %v225, 2147483648
    %v233 = vsel %vm231, %v232, %v230
    %v234 = vsub.f32 0.0, %v233
    %v235 = vsub.f32 %v234, %v203
    %v236 = vmul.f32 %v235, 1.442695
    %v237 = vpow.pop %v236
    %v238 = vadd.f32 %v207, %v237
    %vm239 = vcmp.eq.s32.totalorder %v172, %v224
    %vm240 = vmor %vm208, %vm239
    %v241 = vsel %vm239, 2147483647, %v209
    %v242 = vand.u32 %v241, 65535
    %v243 = vshra.s32 %v241, 16
    %v244 = vcvt.s32.f32 %v242
    %v245 = vcvt.s32.f32 %v243
    %246 = vmin.xlane.f32.xlu0 %v245
    %v247 = vpop.xlane.xlu0 %246
    %vm248 = vcmp.eq.f32.partialorder %v245, %v247
    %v249 = vsel %vm248, %v244, inf
    %250 = vmin.xlane.f32.xlu0 %v249
    %v251 = vpop.xlane.xlu0 %250
    %v252 = vcvt.f32.s32 %v251
    %v253 = vcvt.f32.s32 %v247
    %v254 = vshll.u32 %v253, 16
    %v255 = vadd.s32 %v254, %v252
    %v256 = vand.u32 %v255, 15
    %v257 = vand.u32 %v255, 4294967280
    %v259 = vrsqrt.pop %v257
    %v260 = vmul.f32 %v257, %v259
    %vm261 = vcmp.eq.f32.partialorder %v257, inf
    %v262 = vsel %vm261, %v257, %v260
    %vm263 = vcmp.eq.f32.partialorder %v257, 0.0
    %v264 = vand.u32 %v257, 2147483648
    %v265 = vsel %vm263, %v264, %v262
    %v266 = vsub.f32 0.0, %v265
    %v267 = vsub.f32 %v266, %v203
    %v268 = vmul.f32 %v267, 1.442695
    %v269 = vpow.pop %v268
    %v270 = vadd.f32 %v238, %v269
    %vm271 = vcmp.eq.s32.totalorder %v172, %v256
    %vm272 = vmor %vm240, %vm271
    %v273 = vsel %vm271, 2147483647, %v241
    %v274 = vand.u32 %v273, 65535
    %v275 = vshra.s32 %v273, 16
    %v276 = vcvt.s32.f32 %v274
    %v277 = vcvt.s32.f32 %v275
    %278 = vmin.xlane.f32.xlu0 %v277
    %v279 = vpop.xlane.xlu0 %278
    %vm280 = vcmp.eq.f32.partialorder %v277, %v279
    %v281 = vsel %vm280, %v276, inf
    %282 = vmin.xlane.f32.xlu0 %v281
    %v283 = vpop.xlane.xlu0 %282
    %v284 = vcvt.f32.s32 %v283
    %v285 = vcvt.f32.s32 %v279
    %v286 = vshll.u32 %v285, 16
    %v287 = vadd.s32 %v286, %v284
    %v288 = vand.u32 %v287, 15
    %v289 = vand.u32 %v287, 4294967280
    %v291 = vrsqrt.pop %v289
    %v292 = vmul.f32 %v289, %v291
    %vm293 = vcmp.eq.f32.partialorder %v289, inf
    %v294 = vsel %vm293, %v289, %v292
    %vm295 = vcmp.eq.f32.partialorder %v289, 0.0
    %v296 = vand.u32 %v289, 2147483648
    %v297 = vsel %vm295, %v296, %v294
    %v298 = vsub.f32 0.0, %v297
    %v299 = vsub.f32 %v298, %v203
    %v300 = vmul.f32 %v299, 1.442695
    %v301 = vpow.pop %v300
    %v302 = vadd.f32 %v270, %v301
    %vm303 = vcmp.eq.s32.totalorder %v172, %v288
    %vm304 = vmor %vm272, %vm303
    %v305 = vrcp.pop %v302
    %v306 = vmul.f32 %v302, %v305
    %v307 = vsub.f32 2.0, %v306
    %v308 = vmul.f32 %v305, %v307
    %v310 = vrsqrt.pop %v175
    %v311 = vmul.f32 %v175, %v310
    %vm312 = vcmp.eq.f32.partialorder %v175, inf
    %v313 = vsel %vm312, %v175, %v311
    %vm314 = vcmp.eq.f32.partialorder %v175, 0.0
    %v315 = vand.u32 %v175, 2147483648
    %v316 = vsel %vm314, %v315, %v313
    %v317 = vsub.f32 0.0, %v316
    %v318 = vsub.f32 %v317, %v203
    %v319 = vmul.f32 %v318, 1.442695
    %v320 = vpow.pop %v319
    %v321 = vmul.f32 %v320, %v308
    %v322 = vsel %vm304, %v321, 0.0
    %323 = vst [vmem:[#allocation2] sm:$0xff] %v322
    %vm324 = vcmask 7168
    %v325 = vsel %vm324, %v206, %v237
    %vm326 = vcmask 15360
    %v327 = vsel %vm326, %v325, %v269
    %vm328 = vcmask 23552
    %v329 = vsel %vm328, %v327, %v301
    %v330 = vmul.f32 %v329, %v308
    %vm331 = vcmask 31744
    %332 = vst.msk [vmem:[%s4] sm:$0xff] %vm331, %v330
    // Predicated region
    $region14: #{tpu_custom_call.1} parent=1 // pred_check
      _
    $region15: #{tpu_custom_call.1} parent=1 // pred_check_branch
      %334 = sbr.rel (0) target = $region17
    $region16: #{tpu_custom_call.1} parent=1 // pred_region
      %s336 = ssub.s32 128, 128
      %337 = vsyncadd [#allocation3], %s336
      %s339 = sshll.u32 [#allocation2], 4
      %s340 = int_to_ptr.vmem [resolvable:$true] %s339
      %342 = dma.vmem_to_hbm [thread:$0]  %s340, 128, %s3, [#allocation3]
    $region17: #{tpu_custom_call.1} parent=1 // pred_fallthru
      _
    // Predicated region
    $region18: #{tpu_custom_call.1} parent=1 // pred_check
      _
    $region19: #{tpu_custom_call.1} parent=1 // pred_check_branch
      %344 = sbr.rel (0) target = $region21
    $region20: #{tpu_custom_call.1} parent=1 // pred_region
      _
    $region21: #{tpu_custom_call.1} parent=1 // pred_fallthru
      _
    // Predicated region
    $region22: #{tpu_custom_call.1} parent=1 // pred_check
      _
    $region23: #{tpu_custom_call.1} parent=1 // pred_check_branch
      %346 = sbr.rel (0) target = $region25
    $region24: #{tpu_custom_call.1} parent=1 // pred_region
      %347 = dma.done [#allocation3], 128
    $region25: #{tpu_custom_call.1} parent=1 // pred_fallthru
      _
    // Predicated region
    $region26: #{tpu_custom_call.1} parent=1 // pred_check
      _
    $region27: #{tpu_custom_call.1} parent=1 // pred_check_branch
      %349 = sbr.rel (0) target = $region29
    $region28: #{tpu_custom_call.1} parent=1 // pred_region
      _
    $region29: #{tpu_custom_call.1} parent=1 // pred_fallthru
      _
    %350 = vsyncpa [#allocation3], 1

</llo_original>
